<compile_context>
chip_gen: v6e
topology: v6e:2x2x1
jax: 0.10.0
libtpu: 0.0.40
codegen_flags: <defaults>
</compile_context>

<pallas_src>
import math
from dataclasses import dataclass
from functools import partial

import jax
import jax.numpy as jnp
from jax.experimental import pallas as pl
from jax.experimental.pallas import tpu as pltpu  # noqa: F401  (no TPU-specific params needed at this size)

_LN_EPS = 1e-5  # PyTorch nn.LayerNorm default


# ----------------------------------------------------------------------------
# In-kernel helpers
# ----------------------------------------------------------------------------
def _gelu(x):
    # TODO(synk): tanh-approx GELU (PyTorch nn.GELU uses the erf form; difference < 1e-3).
    return jax.nn.gelu(x, approximate=True)


def _layer_norm(h, g, b):
    mu = jnp.mean(h, axis=-1, keepdims=True)
    var = jnp.mean(jnp.square(h - mu), axis=-1, keepdims=True)
    return (h - mu) * jax.lax.rsqrt(var + _LN_EPS) * g + b


def _dot(a, b):
    return jnp.dot(a, b, preferred_element_type=jnp.float32)


# ----------------------------------------------------------------------------
# Pallas kernel bodies (all grid-free, whole-array VMEM blocks)
# ----------------------------------------------------------------------------
def _fused_mlp_kernel(x_ref, w1_ref, b1_ref, g_ref, be_ref, w2_ref, b2_ref, o_ref,
                      *, use_ln, use_sigmoid):
    """o = [sigmoid]( GELU( [LayerNorm](x @ W1 + b1) ) @ W2 + b2 )"""
    h = _dot(x_ref[...], w1_ref[...]) + b1_ref[...]
    if use_ln:
        h = _layer_norm(h, g_ref[...], be_ref[...])
    h = _gelu(h)
    y = _dot(h, w2_ref[...]) + b2_ref[...]
    if use_sigmoid:
        y = jax.nn.sigmoid(y)
    o_ref[...] = y


def _linear_kernel(x_ref, w_ref, b_ref, o_ref):
    o_ref[...] = _dot(x_ref[...], w_ref[...]) + b_ref[...]


def _branch_expand_kernel(x_ref, bw1, bb1, bw2, bb2, w1, b1, g, be, w2, b2,
                          logit_ref, exp_ref, *, nb):
    """Fused per-depth kernel: branch_predictor logits + all node_expander branches.
    x:(R,H) -> logits:(R,max_branches), expanded:(nb,R,H)."""
    x = x_ref[...]
    h = _gelu(_dot(x, bw1[...]) + bb1[...])                # branch_predictor: Linear->GELU->Linear
    logit_ref[...] = _dot(h, bw2[...]) + bb2[...]
    for i in range(nb):                                    # tiny static loop over branches
        hh = _dot(x, w1[i]) + b1[i]
        hh = _gelu(_layer_norm(hh, g[i], be[i]))
        exp_ref[i] = _dot(hh, w2[i]) + b2[i]


def _thought_gen_kernel(x2_ref, pooled_ref, pw_ref, pb_ref, w1_ref, b1_ref, g_ref, be_ref,
                        w2_ref, b2_ref, dw_ref, db_ref, o_ref, w_ref, *, bf):
    """Whole ThoughtGenerator for every beam node, batched.

    x2:(NB*S, H) rows of all beam nodes; pooled:(NB, H) per-node seq-mean of ORIGINAL hs.
    Outputs: raw branch thoughts (bf, NB*S, H) and diversity softmax weights (NB, bf)."""
    proj = _dot(x2_ref[...], pw_ref[...]) + pb_ref[...]    # thought_projector over all rows
    for i in range(bf):                                    # tiny static loop over branches
        h = _dot(proj, w1_ref[i]) + b1_ref[i]
        h = _gelu(_layer_norm(h, g_ref[i], be_ref[i]))
        o_ref[i] = _dot(h, w2_ref[i]) + b2_ref[i]          # (NB*S, H)
    # diversity head: softmax over branches per (node,batch) row
    logits = _dot(pooled_ref[...], dw_ref[...]) + db_ref[...]   # (NB, bf)
    logits = logits - jnp.max(logits, axis=-1, keepdims=True)
    e = jnp.exp(logits)
    w_ref[...] = e / jnp.sum(e, axis=-1, keepdims=True)
    # TODO(synk): reference also computes an unused pairwise-similarity diversity_loss; omitted.


def _value_fn_kernel(x_ref, v1w, v1b, vg, vbe, v2w, v2b, v3w, v3b,
                     u1w, u1b, u2w, u2b, o_ref):
    """Value + uncertainty heads for all children at once.  x:(R,H) -> o:(R,2)=[value, sigmoid(unc)]"""
    x = x_ref[...]
    h = _dot(x, v1w[...]) + v1b[...]
    h = _gelu(_layer_norm(h, vg[...], vbe[...]))
    h = _gelu(_dot(h, v2w[...]) + v2b[...])
    val = _dot(h, v3w[...]) + v3b[...]                     # (R, 1)
    u = _gelu(_dot(x, u1w[...]) + u1b[...])
    unc = jax.nn.sigmoid(_dot(u, u2w[...]) + u2b[...])     # (R, 1)
    o_ref[:, 0:1] = val
    o_ref[:, 1:2] = unc


def _path_attn_eval_kernel(x_ref, wqkv_ref, bqkv_ref, wo_ref, bo_ref,
                           pw1_ref, pb1_ref, pw2_ref, pb2_ref, o_ref, *, num_heads):
    """Fused per-path: QKV proj + multi-head self-attn + output proj + path_evaluator.
    x:(P, L, H) -> o:(P, 1) sigmoid scores (P = num_paths * batch)."""
    x = x_ref[...]
    P, L, H = x.shape
    dh = H // num_heads
    scale = 1.0 / math.sqrt(dh)
    wqkv = wqkv_ref[...]; bqkv = bqkv_ref[...]
    wo = wo_ref[...]; bo = bo_ref[...]
    pw1 = pw1_ref[...]; pb1 = pb1_ref[...]
    pw2 = pw2_ref[...]; pb2 = pb2_ref[...]
    for p in range(P):                                     # static unroll, tiny P
        xp = x[p]                                          # (L, H)
        qkv = _dot(xp, wqkv) + bqkv                        # (L, 3H)
        out = jnp.zeros((L, H), jnp.float32)
        for h in range(num_heads):
            lo = h * dh
            q = qkv[:, lo:lo + dh] * scale
            k = qkv[:, H + lo:H + lo + dh]
            v = qkv[:, 2 * H + lo:2 * H + lo + dh]
            s = jax.lax.dot_general(q, k, (((1,), (1,)), ((), ())),
                                    preferred_element_type=jnp.float32)   # (L, L)
            s = s - jnp.max(s, axis=-1, keepdims=True)
            e = jnp.exp(s)
            pm = e / jnp.sum(e, axis=-1, keepdims=True)
            hv = _dot(pm, v)                               # (L, dh)
            out = out + _dot(hv, wo[lo:lo + dh, :])        # per-head slice of output proj
        out = out + bo
        last = out[L - 1:L, :]                             # attn_output[:, -1]
        hpe = _gelu(_dot(last, pw1) + pb1)
        sc = jax.nn.sigmoid(_dot(hpe, pw2) + pb2)          # (1, 1)
        o_ref[p:p + 1, :] = sc


def _integrate_project_kernel(x_ref, r_ref, oiw, oib, oig, oibe, opw, opb, lng, lnb, o_ref):
    """output_integration (Linear->LN->Dropout=id) + output_projection + residual + LayerNorm."""
    reasoned = _layer_norm(_dot(x_ref[...], oiw[...]) + oib[...], oig[...], oibe[...])
    h = _dot(reasoned, opw[...]) + opb[...] + r_ref[...]
    o_ref[...] = _layer_norm(h, lng[...], lnb[...])


# ----------------------------------------------------------------------------
# pallas_call wrappers (grid-free, jitted so each shape combo compiles once)
# ----------------------------------------------------------------------------
@partial(jax.jit, static_argnames=("use_ln", "use_sigmoid"))
def fused_mlp(x, w1, b1, w2, b2, g=None, be=None, *, use_ln, use_sigmoid=False):
    n = x.shape[0]
    dh = w1.shape[1]
    dout = w2.shape[1]
    if g is None:
        g = jnp.ones((1, dh), jnp.float32)
        be = jnp.zeros((1, dh), jnp.float32)
    return pl.pallas_call(
        partial(_fused_mlp_kernel, use_ln=use_ln, use_sigmoid=use_sigmoid),
        out_shape=jax.ShapeDtypeStruct((n, dout), jnp.float32),
    )(x, w1, b1, g, be, w2, b2)


@jax.jit
def linear(x, w, b):
    return pl.pallas_call(
        _linear_kernel,
        out_shape=jax.ShapeDtypeStruct((x.shape[0], w.shape[1]), jnp.float32),
    )(x, w, b)


@partial(jax.jit, static_argnames=("bf", "batch"))
def thought_generator(tg, hs, *, bf, batch):
    """All ThoughtGenerator branches for every beam node; rows ordered (beam_node, branch, batch)."""
    NB, S, H = hs.shape
    raw, wts = pl.pallas_call(
        partial(_thought_gen_kernel, bf=bf),
        out_shape=(jax.ShapeDtypeStruct((bf, NB * S, H), jnp.float32),
                   jax.ShapeDtypeStruct((NB, bf), jnp.float32)),
    )(hs.reshape(NB * S, H), hs.mean(axis=1),
      tg["proj"]["w"], tg["proj"]["b"],
      tg["gen"]["w1"], tg["gen"]["b1"], tg["gen"]["g"], tg["gen"]["be"],
      tg["gen"]["w2"], tg["gen"]["b2"], tg["div"]["w"], tg["div"]["b"])
    t = raw.reshape(bf, NB, S, H)
    if bf > 1:
        t = t * wts.T[:, :, None, None]                    # per-(node,batch) diversity weights
    nb = NB // batch
    # (branch, beam*batch, S, H) -> (beam, branch, batch, S, H) -> reference child-row order
    return t.reshape(bf, nb, batch, S, H).transpose(1, 0, 2, 3, 4).reshape(nb * bf * batch, S, H)


@jax.jit
def value_fn(vf, pooled):
    return pl.pallas_call(
        _value_fn_kernel,
        out_shape=jax.ShapeDtypeStruct((pooled.shape[0], 2), jnp.float32),
    )(pooled, vf["v1"]["w"], vf["v1"]["b"], vf["v_ln"]["g"], vf["v_ln"]["b"],
      vf["v2"]["w"], vf["v2"]["b"], vf["v3"]["w"], vf["v3"]["b"],
      vf["u1"]["w"], vf["u1"]["b"], vf["u2"]["w"], vf["u2"]["b"])


@partial(jax.jit, static_argnames=("num_heads",))
def path_attn_scores(attn, pe, paths2, *, num_heads):
    P = paths2.shape[0]
    return pl.pallas_call(
        partial(_path_attn_eval_kernel, num_heads=num_heads),
        out_shape=jax.ShapeDtypeStruct((P, 1), jnp.float32),
    )(paths2, attn["wqkv"], attn["bqkv"], attn["wo"], attn["bo"],
      pe["l1"]["w"], pe["l1"]["b"], pe["l2"]["w"], pe["l2"]["b"])


@jax.jit
def integrate_and_project(x, res, oi, op_w, op_b, ln):
    return pl.pallas_call(
        _integrate_project_kernel,
        out_shape=jax.ShapeDtypeStruct((x.shape[0], op_w.shape[1]), jnp.float32),
    )(x, res, oi["l"]["w"], oi["l"]["b"], oi["ln"]["g"], oi["ln"]["b"],
      op_w, op_b, ln["g"], ln["b"])


# ----------------------------------------------------------------------------
# Jitted composite regions (all device-side, no host syncs inside)
# ----------------------------------------------------------------------------
@jax.jit
def tree_depth_step(bp, ne_stacked, nodes2):
    """branch_predictor probs and all node_expander branches for one depth, one fused kernel."""
    nb = ne_stacked["w2"].shape[0]
    H = ne_stacked["w2"].shape[2]
    logits, expanded = pl.pallas_call(
        partial(_branch_expand_kernel, nb=nb),
        out_shape=(jax.ShapeDtypeStruct((nodes2.shape[0], bp["l2"]["w"].shape[1]), jnp.float32),
                   jax.ShapeDtypeStruct((nb, nodes2.shape[0], H), jnp.float32)),
    )(nodes2, bp["l1"]["w"], bp["l1"]["b"], bp["l2"]["w"], bp["l2"]["b"],
      ne_stacked["w1"], ne_stacked["b1"], ne_stacked["g"], ne_stacked["be"],
      ne_stacked["w2"], ne_stacked["b2"])
    probs = jax.nn.softmax(logits, axis=-1)
    return probs, expanded


@partial(jax.jit, static_argnames=("num_heads",))
def score_paths(attn, pe, paths4, *, num_heads):
    """All leaf paths scored in one fused kernel; best path selected on device."""
    NP, B, L, H = paths4.shape
    scores = path_attn_scores(attn, pe, paths4.reshape(NP * B, L, H), num_heads=num_heads)
    idx = jnp.argmax(scores[:, 0])
    # TODO(synk): the reference argmaxes over num_paths*batch rows then indexes leaf_paths with it
    # (can overrun the list); we map the winning row back to its path with // batch.
    best = jnp.take(paths4, idx // B, axis=0)              # (B, L, H)
    return scores, best


@partial(jax.jit, static_argnames=("cfg",))
def trm_forward(p, hidden_states, *, cfg):
    """TreeReasoningModule forward (input proj -> TreeOfThoughtReasoner -> out proj + LN)."""
    assert not cfg.use_adaptive_computation
    assert cfg.use_beam_search and cfg.use_value_function
    B, S, H = hidden_states.shape
    x2 = hidden_states.reshape(B * S, H)
    proj = linear(x2, p["input_projection"]["w"], p["input_projection"]["b"]).reshape(B, S, H)

    r = p["reasoner"]
    bf = cfg.branching_factor
    beam_h = proj[None]                                    # (1, B, S, H): beam of one node
    beam_values = jnp.zeros((1,), jnp.float32)
    beam_unc = jnp.zeros((1,), jnp.float32)
    for _depth in range(cfg.max_tree_depth):
        nb = beam_h.shape[0]
        children = thought_generator(r["tg"], beam_h.reshape(nb * B, S, H), bf=bf, batch=B)
        nc = nb * bf                                       # children, node-major / branch-minor
        pooled = children.mean(axis=1)                     # (nc*B, H)
        vu = value_fn(r["vf"], pooled).reshape(nc, B, 2)
        child_values = vu[:, :, 0].mean(axis=1)            # value.mean() per child (scalar/batch)
        child_unc = vu[:, :, 1].mean(axis=1)
        k = min(cfg.beam_size, nc)
        beam_values, top_idx = jax.lax.top_k(child_values, k)   # on-device beam selection
        beam_unc = jnp.take(child_unc, top_idx)
        beam_h = jnp.take(children.reshape(nc, B, S, H), top_idx, axis=0)

    final = beam_h                                         # (k, B, S, H), sorted by value desc
    nfin = final.shape[0]
    if cfg.use_self_consistency and nfin > 1:
        pooled_f = final.mean(axis=2)                      # (nfin, B, H)
        pair_rows, pair_idx = [], []
        for i in range(nfin):
            for j in range(i + 1, nfin):
                pair_rows.append(jnp.concatenate([pooled_f[i], pooled_f[j]], axis=1))
                pair_idx.append((i, j))
        s = fused_mlp(jnp.concatenate(pair_rows, axis=0),
                      r["cc"]["l1"]["w"], r["cc"]["l1"]["b"],
                      r["cc"]["l2"]["w"], r["cc"]["l2"]["b"],
                      r["cc"]["ln"]["g"], r["cc"]["ln"]["b"],
                      use_ln=True, use_sigmoid=True).reshape(len(pair_idx), B)
        scores = jnp.zeros((B, nfin, nfin), jnp.float32)
        for pi, (i, j) in enumerate(pair_idx):
            scores = scores.at[:, i, j].set(s[pi])
            scores = scores.at[:, j, i].set(s[pi])
        for i in range(nfin):
            scores = scores.at[:, i, i].set(1.0)
        best = jnp.argmax(scores.mean(axis=2), axis=1)     # (B,)
        output = final[best, jnp.arange(B)]                # on-device per-batch gather
    else:
        output = jnp.take(final, jnp.argmax(beam_values), axis=0)

    # output_integration (Linear->LN->Dropout=id) + output_projection + residual + LN, one kernel
    out2 = integrate_and_project(output.reshape(B * S, H), x2, r["oi"],
                                 p["output_projection"]["w"], p["output_projection"]["b"],
                                 p["layer_norm"])
    return out2.reshape(B, S, H), beam_values, beam_unc


# ----------------------------------------------------------------------------
# Config + deterministic synthetic parameters (shapes from the module __init__)
# ----------------------------------------------------------------------------
@dataclass(frozen=True)
class TreeConfig:
    hidden_size: int = 32
    branching_factor: int = 2
    max_tree_depth: int = 2          # inner TreeOfThoughtReasoner depth
    beam_size: int = 2
    pruning_threshold: float = 0.0
    dropout: float = 0.0
    use_value_function: bool = True
    use_uncertainty_estimation: bool = True
    use_self_consistency: bool = True
    use_beam_search: bool = True
    use_adaptive_computation: bool = False


def _lin(key, din, dout):
    return {"w": 0.02 * jax.random.normal(key, (din, dout), jnp.float32),
            "b": jnp.zeros((1, dout), jnp.float32)}


def _ln_p(d):
    return {"g": jnp.ones((1, d), jnp.float32), "b": jnp.zeros((1, d), jnp.float32)}


def _stacked_mlp(key, n, din, dh, dout):
    ks = jax.random.split(key, 2 * n)
    w1 = jnp.stack([0.02 * jax.random.normal(ks[2 * i], (din, dh), jnp.float32) for i in range(n)])
    w2 = jnp.stack([0.02 * jax.random.normal(ks[2 * i + 1], (dh, dout), jnp.float32) for i in range(n)])
    return {"w1": w1, "b1": jnp.zeros((n, 1, dh), jnp.float32),
            "g": jnp.ones((n, 1, dh), jnp.float32), "be": jnp.zeros((n, 1, dh), jnp.float32),
            "w2": w2, "b2": jnp.zeros((n, 1, dout), jnp.float32)}


def init_params(key, cfg, *, max_branches):
    H = cfg.hidden_size
    bf = cfg.branching_factor
    ks = iter(jax.random.split(key, 64))
    p = {}
    # TreeReasoning (outer)
    p["node_encoder"] = {"l1": _lin(next(ks), H, H), "ln": _ln_p(H), "l2": _lin(next(ks), H, H)}
    p["branch_predictor"] = {"l1": _lin(next(ks), H, H), "l2": _lin(next(ks), H, max_branches)}
    p["node_expander"] = _stacked_mlp(next(ks), max_branches, H, H, H)
    wq, wk, wv, wo = (_lin(next(ks), H, H) for _ in range(4))
    p["tree_attention"] = {"wqkv": jnp.concatenate([wq["w"], wk["w"], wv["w"]], axis=1),
                           "bqkv": jnp.concatenate([wq["b"], wk["b"], wv["b"]], axis=1),
                           "wo": wo["w"], "bo": wo["b"]}
    p["path_evaluator"] = {"l1": _lin(next(ks), H, H), "l2": _lin(next(ks), H, 1)}
    # TreeReasoningModule / TreeOfThoughtReasoner
    trm = {"input_projection": _lin(next(ks), H, H),
           "output_projection": _lin(next(ks), H, H),
           "layer_norm": _ln_p(H)}
    tg = {"proj": _lin(next(ks), H, H),
          "gen": _stacked_mlp(next(ks), bf, H, H, H),
          "div": _lin(next(ks), H, bf)}
    vf = {"v1": _lin(next(ks), H, H), "v_ln": _ln_p(H), "v2": _lin(next(ks), H, H // 2),
          "v3": _lin(next(ks), H // 2, 1),
          "u1": _lin(next(ks), H, H // 2), "u2": _lin(next(ks), H // 2, 1)}
    cc = {"l1": _lin(next(ks), 2 * H, H), "ln": _ln_p(H), "l2": _lin(next(ks), H, 1)}
    oi = {"l": _lin(next(ks), H, H), "ln": _ln_p(H)}
    trm["reasoner"] = {"tg": tg, "vf": vf, "cc": cc, "oi": oi}
    p["trm"] = trm
    return p


# ----------------------------------------------------------------------------
# TreeReasoning.forward — host Python only for the data-dependent tree topology
# ----------------------------------------------------------------------------
def tree_reasoning_fwd(params, cfg, hidden_states, attention_mask=None,
                       *, max_tree_depth=2, max_branches=2, num_heads=4):
    B, S, H = hidden_states.shape
    root_node = hidden_states[:, 0]                        # same result for seq_len == 1
    ne = params["node_encoder"]
    root_encoding = fused_mlp(root_node, ne["l1"]["w"], ne["l1"]["b"],
                              ne["l2"]["w"], ne["l2"]["b"], ne["ln"]["g"], ne["ln"]["b"],
                              use_ln=True)                 # [B, H]
    current_nodes = [root_encoding]
    all_nodes = [root_encoding]
    node_depths = [0]
    node_parents = [-1]
    leaf_paths = []
    for depth in range(max_tree_depth):
        num_cur = len(current_nodes)
        nodes2 = jnp.concatenate(current_nodes, axis=0)    # (num_cur*B, H)
        probs, expanded = tree_depth_step(params["branch_predictor"],
                                          params["node_expander"], nodes2)
        # Single tiny device->host fetch per depth: the prune rule (reference's .item()) drives
        # the Python tree topology, so it cannot be kept on device without changing semantics.
        probs_host = jax.device_get(probs)
        next_nodes = []
        base = len(all_nodes)
        for node_idx in range(num_cur):
            for branch in range(max_branches):
                if probs_host[node_idx * B, branch] < 0.1 and len(next_nodes) > 0:
                    continue
                child = expanded[branch, node_idx * B:(node_idx + 1) * B]   # (B, H), lazy slice
                all_nodes.append(child)
                next_nodes.append(child)
                # TODO(synk): the reference computes parent_idx after appending the child, which
                # makes nodes their own parents and the path walk non-terminating; we use the
                # intended parent index (the position of `node` in all_nodes).
                parent_idx = base - num_cur + node_idx
                node_parents.append(parent_idx)
                node_depths.append(depth + 1)
                if depth == max_tree_depth - 1:
                    path = [child]
                    cur = parent_idx
                    while cur >= 0:
                        path.append(all_nodes[cur])
                        cur = node_parents[cur]
                    leaf_paths.append(jnp.stack(path[::-1], axis=1))        # (B, L, H)
        current_nodes = next_nodes
        if not current_nodes:
            break

    all_nodes_tensor = jnp.stack(all_nodes, axis=1)        # (B, num_nodes, H)
    path_scores = None
    best_path = None
    if leaf_paths:
        paths4 = jnp.stack(leaf_paths, axis=0)             # (num_paths, B, L, H)
        path_scores, best_path = score_paths(params["tree_attention"],
                                             params["path_evaluator"], paths4,
                                             num_heads=num_heads)

    # TreeReasoningModule (entirely on-device, single jit dispatch)
    output, beam_values, beam_unc = trm_forward(params["trm"], hidden_states, cfg=cfg)

    # static node count (beam search with full branching => fixed topology)
    num_nodes = 1
    nbm = 1
    for _ in range(cfg.max_tree_depth):
        nc = nbm * cfg.branching_factor
        num_nodes += nc
        nbm = min(cfg.beam_size, nc)
    inner_trace = {"num_nodes_explored": num_nodes,
                   "max_depth": cfg.max_tree_depth,
                   "final_values": beam_values,            # device arrays: no .item() syncs
                   "final_uncertainties": beam_unc}
    # TODO(synk): the reference also serializes the full tree structure (metadata only); omitted.
    reasoning_info = {"all_nodes": all_nodes_tensor, "node_depths": node_depths,
                      "node_parents": node_parents, "path_scores": path_scores,
                      "best_path": best_path}
    return (output, inner_trace), reasoning_info


# ----------------------------------------------------------------------------
# Driver
# ----------------------------------------------------------------------------
if __name__ == "__main__":
    cfg = TreeConfig()
    B, S, H = 2, 8, cfg.hidden_size
    MAX_TREE_DEPTH = 2       # TreeReasoning's own depth arg (separate from cfg.max_tree_depth)
    MAX_BRANCHES = 2
    NUM_HEADS = 4

    key = jax.random.PRNGKey(0)
    pkey, xkey = jax.random.split(key)
    params = init_params(pkey, cfg, max_branches=MAX_BRANCHES)
    hidden_states = jax.random.normal(xkey, (B, S, H), jnp.float32)

    (output, inner_trace), reasoning_info = tree_reasoning_fwd(
        params, cfg, hidden_states,
        max_tree_depth=MAX_TREE_DEPTH, max_branches=MAX_BRANCHES, num_heads=NUM_HEADS)

    jax.block_until_ready(output)
    assert output.shape == (B, S, H)
    assert bool(jnp.all(jnp.isfinite(output)))
    assert reasoning_info["best_path"] is not None
    print("KERNEL_OK")
</pallas_src>

<mosaic_0001>
module attributes {stable_mosaic.version = 11 : i64} {
  func.func @_fused_mlp_kernel(%arg0: memref<2x32xf32, #tpu.memory_space<vmem>>, %arg1: memref<32x32xf32, #tpu.memory_space<vmem>>, %arg2: memref<1x32xf32, #tpu.memory_space<vmem>>, %arg3: memref<1x32xf32, #tpu.memory_space<vmem>>, %arg4: memref<1x32xf32, #tpu.memory_space<vmem>>, %arg5: memref<32x32xf32, #tpu.memory_space<vmem>>, %arg6: memref<1x32xf32, #tpu.memory_space<vmem>>, %arg7: memref<2x32xf32, #tpu.memory_space<vmem>>) attributes {dimension_semantics = [], scalar_prefetch = 0 : i64, scratch_operands = 0 : i64, tpu.core_type = #tpu.core_type<tc>} {
    %c0 = arith.constant 0 : index
    %c0_0 = arith.constant 0 : index
    %0 = vector.load %arg0[%c0, %c0_0] : memref<2x32xf32, #tpu.memory_space<vmem>>, vector<2x32xf32>
    %c0_1 = arith.constant 0 : index
    %c0_2 = arith.constant 0 : index
    %1 = vector.load %arg1[%c0_1, %c0_2] : memref<32x32xf32, #tpu.memory_space<vmem>>, vector<32x32xf32>
    %cst = arith.constant dense<0.000000e+00> : vector<2x32xf32>
    %2 = tpu.matmul %0, %1, %cst {dimension_numbers = #tpu.dot_dimension_numbers<[1], [0], [0], [1], [0, 0, 1, 1], [], []>} : vector<2x32xf32>, vector<32x32xf32>, vector<2x32xf32> -> vector<2x32xf32>
    %c0_3 = arith.constant 0 : index
    %c0_4 = arith.constant 0 : index
    %3 = vector.load %arg2[%c0_3, %c0_4] : memref<1x32xf32, #tpu.memory_space<vmem>>, vector<1x32xf32>
    %4 = vector.broadcast %3 : vector<1x32xf32> to vector<2x32xf32>
    %5 = arith.addf %2, %4 : vector<2x32xf32>
    %c0_5 = arith.constant 0 : index
    %c0_6 = arith.constant 0 : index
    %6 = vector.load %arg3[%c0_5, %c0_6] : memref<1x32xf32, #tpu.memory_space<vmem>>, vector<1x32xf32>
    %c0_7 = arith.constant 0 : index
    %c0_8 = arith.constant 0 : index
    %7 = vector.load %arg4[%c0_7, %c0_8] : memref<1x32xf32, #tpu.memory_space<vmem>>, vector<1x32xf32>
    %cst_9 = arith.constant dense<0.000000e+00> : vector<2xf32>
    %8 = vector.multi_reduction <add>, %5, %cst_9 [1] : vector<2x32xf32> to vector<2xf32>
    %9 = vector.shape_cast %8 : vector<2xf32> to vector<2x1xf32>
    %cst_10 = arith.constant 3.200000e+01 : f32
    %10 = vector.broadcast %cst_10 : f32 to vector<2x1xf32>
    %11 = arith.divf %9, %10 : vector<2x1xf32>
    %12 = vector.broadcast %11 : vector<2x1xf32> to vector<2x32xf32>
    %13 = arith.subf %5, %12 : vector<2x32xf32>
    %14 = arith.mulf %13, %13 : vector<2x32xf32>
    %cst_11 = arith.constant dense<0.000000e+00> : vector<2xf32>
    %15 = vector.multi_reduction <add>, %14, %cst_11 [1] : vector<2x32xf32> to vector<2xf32>
    %16 = vector.shape_cast %15 : vector<2xf32> to vector<2x1xf32>
    %cst_12 = arith.constant 3.200000e+01 : f32
    %17 = vector.broadcast %cst_12 : f32 to vector<2x1xf32>
    %18 = arith.divf %16, %17 : vector<2x1xf32>
    %19 = vector.broadcast %11 : vector<2x1xf32> to vector<2x32xf32>
    %20 = arith.subf %5, %19 : vector<2x32xf32>
    %cst_13 = arith.constant 9.99999974E-6 : f32
    %21 = vector.broadcast %cst_13 : f32 to vector<2x1xf32>
    %22 = arith.addf %18, %21 : vector<2x1xf32>
    %23 = math.rsqrt %22 : vector<2x1xf32>
    %24 = vector.broadcast %23 : vector<2x1xf32> to vector<2x32xf32>
    %25 = arith.mulf %20, %24 : vector<2x32xf32>
    %26 = vector.broadcast %6 : vector<1x32xf32> to vector<2x32xf32>
    %27 = arith.mulf %25, %26 : vector<2x32xf32>
    %28 = vector.broadcast %7 : vector<1x32xf32> to vector<2x32xf32>
    %29 = arith.addf %27, %28 : vector<2x32xf32>
    %30 = arith.mulf %29, %29 : vector<2x32xf32>
    %31 = arith.mulf %29, %30 : vector<2x32xf32>
    %cst_14 = arith.constant 4.471500e-02 : f32
    %32 = vector.broadcast %cst_14 : f32 to vector<2x32xf32>
    %33 = arith.mulf %32, %31 : vector<2x32xf32>
    %34 = arith.addf %29, %33 : vector<2x32xf32>
    %cst_15 = arith.constant 0.797884583 : f32
    %35 = vector.broadcast %cst_15 : f32 to vector<2x32xf32>
    %36 = arith.mulf %35, %34 : vector<2x32xf32>
    %37 = math.tanh %36 : vector<2x32xf32>
    %cst_16 = arith.constant 1.000000e+00 : f32
    %38 = vector.broadcast %cst_16 : f32 to vector<2x32xf32>
    %39 = arith.addf %38, %37 : vector<2x32xf32>
    %cst_17 = arith.constant 5.000000e-01 : f32
    %40 = vector.broadcast %cst_17 : f32 to vector<2x32xf32>
    %41 = arith.mulf %40, %39 : vector<2x32xf32>
    %42 = arith.mulf %29, %41 : vector<2x32xf32>
    %c0_18 = arith.constant 0 : index
    %c0_19 = arith.constant 0 : index
    %43 = vector.load %arg5[%c0_18, %c0_19] : memref<32x32xf32, #tpu.memory_space<vmem>>, vector<32x32xf32>
    %cst_20 = arith.constant dense<0.000000e+00> : vector<2x32xf32>
    %44 = tpu.matmul %42, %43, %cst_20 {dimension_numbers = #tpu.dot_dimension_numbers<[1], [0], [0], [1], [0, 0, 1, 1], [], []>} : vector<2x32xf32>, vector<32x32xf32>, vector<2x32xf32> -> vector<2x32xf32>
    %c0_21 = arith.constant 0 : index
    %c0_22 = arith.constant 0 : index
    %45 = vector.load %arg6[%c0_21, %c0_22] : memref<1x32xf32, #tpu.memory_space<vmem>>, vector<1x32xf32>
    %46 = vector.broadcast %45 : vector<1x32xf32> to vector<2x32xf32>
    %47 = arith.addf %44, %46 : vector<2x32xf32>
    %c0_23 = arith.constant 0 : index
    %c0_24 = arith.constant 0 : index
    %48 = vector.load %arg7[%c0_23, %c0_24] : memref<2x32xf32, #tpu.memory_space<vmem>>, vector<2x32xf32>
    tpu.vector_store %arg7[%c0_23, %c0_24], %47 {strides = array<i32>} : memref<2x32xf32, #tpu.memory_space<vmem>>, vector<2x32xf32>,
    return
  }
}

</mosaic_0001>

<llo_original>
// kernel: fused_mlp.1
$region0: #{fused_mlp.1}
  #allocation0 [shape = 'u32[]', space=smem, size = 0x4, offset = 0x4, fixed_abs, tag = 'smem constant byte address 0x4 - core index']
  #allocation1 [shape = 'u32[144,128]{1,0:T(1,128)}', space=vmem, size = 0x12000, scoped, tag = 'internal scratch']
  %s0 = inlined_call_operand.hbm [shape: f32[2,32], index: 0, kind: input, shape index: {}]
  %s1 = inlined_call_operand.hbm [shape: f32[32,32], index: 1, kind: input, shape index: {}]
  %s2 = inlined_call_operand.vmem [shape: f32[1,32], index: 2, kind: input, shape index: {}]
  %s3 = inlined_call_operand.vmem [shape: f32[1,32], index: 3, kind: input, shape index: {}]
  %s4 = inlined_call_operand.vmem [shape: f32[1,32], index: 4, kind: input, shape index: {}]
  %s5 = inlined_call_operand.hbm [shape: f32[32,32], index: 5, kind: input, shape index: {}]
  %s6 = inlined_call_operand.vmem [shape: f32[1,32], index: 6, kind: input, shape index: {}]
  %s7 = inlined_call_operand.hbm [shape: f32[2,32], index: 7, kind: output, shape index: {}]
  %s8 = sld [smem:[#allocation0]]
  $region50: #{fused_mlp.1} parent=0
    _
  %s10 = ssub.s32 1, %s8
  %s11 = scalar_select 0, %s10, %s8
  $region1: #{fused_mlp.1} parent=0
    #allocation2 [shape = 'u8[1024]{0}', space=vmem, size = 0x400, scoped, tag = 'input window, operand 0, single buffered']
    #allocation3 [shape = 's32[1]{0}', space=sflag, size = 0x4, scoped, tag = 'scoped memory for fused_mlp.1']
    #allocation4 [shape = 's32[1]{0}', space=sflag, size = 0x4, scoped, tag = 'scoped memory for fused_mlp.1']
    #allocation5 [shape = 'u8[16384]{0}', space=vmem, size = 0x4000, scoped, tag = 'input window, operand 1, single buffered']
    #allocation6 [shape = 's32[1]{0}', space=sflag, size = 0x4, scoped, tag = 'scoped memory for fused_mlp.1']
    #allocation7 [shape = 'u8[16384]{0}', space=vmem, size = 0x4000, scoped, tag = 'input window, operand 5, single buffered']
    #allocation8 [shape = 'u8[1024]{0}', space=vmem, size = 0x400, scoped, tag = 'output window, operand 0, single buffered']
    %12 = vsyncpa [#allocation3], 0
    %13 = vsyncpa [#allocation6], 0
    %14 = vsyncpa [#allocation4], 0
    // Predicated region
    $region2: #{fused_mlp.1} parent=1 // pred_check
      _
    $region3: #{fused_mlp.1} parent=1 // pred_check_branch
      %16 = sbr.rel (0) target = $region5
    $region4: #{fused_mlp.1} parent=1 // pred_region
      %s18 = ssub.s32 32, 32
      %19 = vsyncadd [#allocation3], %s18
      %s21 = sshll.u32 [#allocation2], 4
      %s22 = int_to_ptr.vmem [resolvable:$true] %s21
      %24 = dma.hbm_to_vmem [thread:$0]  %s0, 32, %s22, [#allocation3]
    $region5: #{fused_mlp.1} parent=1 // pred_fallthru
      _
    // Predicated region
    $region6: #{fused_mlp.1} parent=1 // pred_check
      _
    $region7: #{fused_mlp.1} parent=1 // pred_check_branch
      %26 = sbr.rel (0) target = $region9
    $region8: #{fused_mlp.1} parent=1 // pred_region
      %s28 = ssub.s32 512, 512
      %29 = vsyncadd [#allocation6], %s28
      %s30 = sshll.u32 [#allocation5], 4
      %s31 = int_to_ptr.vmem [resolvable:$true] %s30
      %36 = dma.hbm_to_vmem [thread:$0]  %s1, 512, %s31, [#allocation6], 128, 128, 8
    $region9: #{fused_mlp.1} parent=1 // pred_fallthru
      _
    // Predicated region
    $region10: #{fused_mlp.1} parent=1 // pred_check
      _
    $region11: #{fused_mlp.1} parent=1 // pred_check_branch
      %38 = sbr.rel (0) target = $region13
    $region12: #{fused_mlp.1} parent=1 // pred_region
      _
    $region13: #{fused_mlp.1} parent=1 // pred_fallthru
      _
    // Predicated region
    $region14: #{fused_mlp.1} parent=1 // pred_check
      _
    $region15: #{fused_mlp.1} parent=1 // pred_check_branch
      %40 = sbr.rel (0) target = $region17
    $region16: #{fused_mlp.1} parent=1 // pred_region
      _
    $region17: #{fused_mlp.1} parent=1 // pred_fallthru
      _
    // Predicated region
    $region18: #{fused_mlp.1} parent=1 // pred_check
      _
    $region19: #{fused_mlp.1} parent=1 // pred_check_branch
      %42 = sbr.rel (0) target = $region21
    $region20: #{fused_mlp.1} parent=1 // pred_region
      _
    $region21: #{fused_mlp.1} parent=1 // pred_fallthru
      _
    // Predicated region
    $region22: #{fused_mlp.1} parent=1 // pred_check
      _
    $region23: #{fused_mlp.1} parent=1 // pred_check_branch
      %44 = sbr.rel (0) target = $region25
    $region24: #{fused_mlp.1} parent=1 // pred_region
      %s46 = ssub.s32 512, 512
      %47 = vsyncadd [#allocation6], %s46
      %s48 = sshll.u32 [#allocation7], 4
      %s49 = int_to_ptr.vmem [resolvable:$true] %s48
      %54 = dma.hbm_to_vmem [thread:$0]  %s5, 512, %s49, [#allocation6], 128, 128, 8
    $region25: #{fused_mlp.1} parent=1 // pred_fallthru
      _
    // Predicated region
    $region26: #{fused_mlp.1} parent=1 // pred_check
      _
    $region27: #{fused_mlp.1} parent=1 // pred_check_branch
      %56 = sbr.rel (0) target = $region29
    $region28: #{fused_mlp.1} parent=1 // pred_region
      _
    $region29: #{fused_mlp.1} parent=1 // pred_fallthru
      _
    // Predicated region
    $region30: #{fused_mlp.1} parent=1 // pred_check
      _
    $region31: #{fused_mlp.1} parent=1 // pred_check_branch
      %58 = sbr.rel (0) target = $region33
    $region32: #{fused_mlp.1} parent=1 // pred_region
      %59 = dma.done [#allocation3], 32
    $region33: #{fused_mlp.1} parent=1 // pred_fallthru
      _
    // Predicated region
    $region34: #{fused_mlp.1} parent=1 // pred_check
      _
    $region35: #{fused_mlp.1} parent=1 // pred_check_branch
      %61 = sbr.rel (0) target = $region37
    $region36: #{fused_mlp.1} parent=1 // pred_region
      %62 = dma.done [#allocation6], 512
    $region37: #{fused_mlp.1} parent=1 // pred_fallthru
      _
    // Predicated region
    $region38: #{fused_mlp.1} parent=1 // pred_check
      _
    $region39: #{fused_mlp.1} parent=1 // pred_check_branch
      %64 = sbr.rel (0) target = $region41
    $region40: #{fused_mlp.1} parent=1 // pred_region
      %65 = dma.done [#allocation6], 512
    $region41: #{fused_mlp.1} parent=1 // pred_fallthru
      _
    %v66 = vld [vmem:[#allocation2] sm:$0x3]
    %v67 = vld [vmem:[#allocation5] sm:$0xff]
    %v68 = vld [vmem:[#allocation5 + $0x8] sm:$0xff]
    %v69 = vld [vmem:[#allocation5 + $0x10] sm:$0xff]
    %v70 = vld [vmem:[#allocation5 + $0x18] sm:$0xff]
    %v71 = vld [vmem:[%s2] sm:$0x1]
    %v73 = vlaneseq
    %v74 = vshrl.u32 %v73, 7
    %v75 = vsub.s32 0, %v74
    %v76 = vrot.slane %v71, %v75
    %vm78 = vcmask 261120
    %v80 = vsel %vm78, %v66, 0
    %82 = vmatprep.subr.mxu0 0.0
    %83 = vmatpush1.msra.mxu0 0.0
    %84 = vmatprep.subr.mxu0 0.0
    %85 = vmatpush1.msra.mxu0 0.0
    %86 = vmatprep.subr.mxu0 0.0
    %87 = vmatpush1.msra.mxu0 0.0
    %88 = vmatprep.subr.mxu0 0.0
    %89 = vmatpush1.msra.mxu0 0.0
    %90 = vmatprep.subr.mxu0 0.0
    %91 = vmatpush1.msra.mxu0 0.0
    %92 = vmatprep.subr.mxu0 0.0
    %93 = vmatpush1.msra.mxu0 0.0
    %94 = vmatprep.subr.mxu0 0.0
    %95 = vmatpush1.msra.mxu0 0.0
    %96 = vmatprep.subr.mxu0 0.0
    %97 = vmatpush1.msra.mxu0 0.0
    %98 = vmatprep.subr.mxu0 0.0
    %99 = vmatpush1.msra.mxu0 0.0
    %100 = vmatprep.subr.mxu0 0.0
    %101 = vmatpush1.msra.mxu0 0.0
    %102 = vmatprep.subr.mxu0 0.0
    %103 = vmatpush1.msra.mxu0 0.0
    %104 = vmatprep.subr.mxu0 0.0
    %105 = vmatpush1.msra.mxu0 0.0
    %106 = vmatprep.subr.mxu0 0.0
    %107 = vmatpush1.msra.mxu0 %v70
    %108 = vmatprep.subr.mxu0 0.0
    %109 = vmatpush1.msra.mxu0 %v69
    %110 = vmatprep.subr.mxu0 0.0
    %111 = vmatpush1.msra.mxu0 %v68
    %112 = vmatprep.subr.mxu0 0.0
    %113 = vmatpush1.msra.mxu0 %v67
    %114 = vmatprep.subr.mxu0 0.0
    %115 = vmatpush2.msra.mxu0 0.0
    %116 = vmatprep.subr.mxu0 0.0
    %117 = vmatpush2.msra.mxu0 0.0
    %118 = vmatprep.subr.mxu0 0.0
    %119 = vmatpush2.msra.mxu0 0.0
    %120 = vmatprep.subr.mxu0 0.0
    %121 = vmatpush2.msra.mxu0 0.0
    %122 = vmatprep.subr.mxu0 0.0
    %123 = vmatpush2.msra.mxu0 0.0
    %124 = vmatprep.subr.mxu0 0.0
    %125 = vmatpush2.msra.mxu0 0.0
    %126 = vmatprep.subr.mxu0 0.0
    %127 = vmatpush2.msra.mxu0 0.0
    %128 = vmatprep.subr.mxu0 0.0
    %129 = vmatpush2.msra.mxu0 0.0
    %130 = vmatprep.subr.mxu0 0.0
    %131 = vmatpush2.msra.mxu0 0.0
    %132 = vmatprep.subr.mxu0 0.0
    %133 = vmatpush2.msra.mxu0 0.0
    %134 = vmatprep.subr.mxu0 0.0
    %135 = vmatpush2.msra.mxu0 0.0
    %136 = vmatprep.subr.mxu0 0.0
    %137 = vmatpush2.msra.mxu0 0.0
    %138 = vmatprep.subr.mxu0 0.0
    %139 = vmatpush2.msra.mxu0 0.0
    %140 = vmatprep.subr.mxu0 0.0
    %141 = vmatpush2.msra.mxu0 0.0
    %142 = vmatprep.subr.mxu0 0.0
    %143 = vmatpush2.msra.mxu0 0.0
    %144 = vmatprep.subr.mxu0 0.0
    %145 = vmatpush2.msra.mxu0 0.0
    %146 = vmatprep.mubr.f32.mxu0 0.0
    %147 = vmatmul.mubr.f32.gmra.mxu0 %v80
    %v148 = vpop.f32.mrf.mxu0
    %v149 = vadd.f32 %v76, %v148
    %v150 = vpop.f32.mrf.mxu0
    %151 = vdwg.mxu0
    %v152 = vld [vmem:[%s3] sm:$0x1]
    %v153 = vld [vmem:[%s4] sm:$0x1]
    %vm154 = vcmask 254976
    %v155 = vsel %vm154, %v149, 0.0
    %156 = vadd.xlane.f32.xlu0 %v155
    %v157 = vpop.xlane.xlu0 %156
    %v158 = vrcp.pop 32.0
    %v159 = vmul.f32 %v157, %v158
    %v160 = vsub.f32 %v149, %v159
    %v161 = vmul.f32 %v160, %v160
    %v162 = vsel %vm154, %v161, 0.0
    %163 = vadd.xlane.f32.xlu0 %v162
    %v164 = vpop.xlane.xlu0 %163
    %v165 = vmul.f32 %v164, %v158
    %v166 = vadd.f32 %v165, 1e-05
    %v167 = vrsqrt.pop %v166
    %v168 = vmul.f32 %v160, %v167
    %v170 = vlaneseq
    %v171 = vshrl.u32 %v170, 7
    %v172 = vsub.s32 0, %v171
    %v173 = vrot.slane %v152, %v172
    %v175 = vmul.f32 %v168, %v173
    %v177 = vlaneseq
    %v178 = vshrl.u32 %v177, 7
    %v179 = vsub.s32 0, %v178
    %v180 = vrot.slane %v153, %v179
    %v182 = vadd.f32 %v175, %v180
    %v183 = vmul.f32 %v182, %v182
    %v184 = vmul.f32 %v182, %v183
    %v185 = vmul.f32 %v184, 0.044715
    %v186 = vadd.f32 %v182, %v185
    %v187 = vmul.f32 %v186, 0.7978846
    %v188 = vtanh.pop %v187
    %v189 = vadd.f32 %v188, 1.0
    %v190 = vmul.f32 %v189, 0.5
    %v191 = vmul.f32 %v182, %v190
    %v192 = vld [vmem:[#allocation7] sm:$0xff]
    %v193 = vld [vmem:[#allocation7 + $0x8] sm:$0xff]
    %v194 = vld [vmem:[#allocation7 + $0x10] sm:$0xff]
    %v195 = vld [vmem:[#allocation7 + $0x18] sm:$0xff]
    %v196 = vld [vmem:[%s6] sm:$0x1]
    %v198 = vlaneseq
    %v199 = vshrl.u32 %v198, 7
    %v200 = vsub.s32 0, %v199
    %v201 = vrot.slane %v196, %v200
    %v204 = vsel %vm78, %v191, 0
    %206 = vmatprep.subr.mxu0 0.0
    %207 = vmatpush1.msra.mxu0 0.0
    %208 = vmatprep.subr.mxu0 0.0
    %209 = vmatpush1.msra.mxu0 0.0
    %210 = vmatprep.subr.mxu0 0.0
    %211 = vmatpush1.msra.mxu0 0.0
    %212 = vmatprep.subr.mxu0 0.0
    %213 = vmatpush1.msra.mxu0 0.0
    %214 = vmatprep.subr.mxu0 0.0
    %215 = vmatpush1.msra.mxu0 0.0
    %216 = vmatprep.subr.mxu0 0.0
    %217 = vmatpush1.msra.mxu0 0.0
    %218 = vmatprep.subr.mxu0 0.0
    %219 = vmatpush1.msra.mxu0 0.0
    %220 = vmatprep.subr.mxu0 0.0
    %221 = vmatpush1.msra.mxu0 0.0
    %222 = vmatprep.subr.mxu0 0.0
    %223 = vmatpush1.msra.mxu0 0.0
    %224 = vmatprep.subr.mxu0 0.0
    %225 = vmatpush1.msra.mxu0 0.0
    %226 = vmatprep.subr.mxu0 0.0
    %227 = vmatpush1.msra.mxu0 0.0
    %228 = vmatprep.subr.mxu0 0.0
    %229 = vmatpush1.msra.mxu0 0.0
    %230 = vmatprep.subr.mxu0 0.0
    %231 = vmatpush1.msra.mxu0 %v195
    %232 = vmatprep.subr.mxu0 0.0
    %233 = vmatpush1.msra.mxu0 %v194
    %234 = vmatprep.subr.mxu0 0.0
    %235 = vmatpush1.msra.mxu0 %v193
    %236 = vmatprep.subr.mxu0 0.0
    %237 = vmatpush1.msra.mxu0 %v192
    %238 = vmatprep.subr.mxu0 0.0
    %239 = vmatpush2.msra.mxu0 0.0
    %240 = vmatprep.subr.mxu0 0.0
    %241 = vmatpush2.msra.mxu0 0.0
    %242 = vmatprep.subr.mxu0 0.0
    %243 = vmatpush2.msra.mxu0 0.0
    %244 = vmatprep.subr.mxu0 0.0
    %245 = vmatpush2.msra.mxu0 0.0
    %246 = vmatprep.subr.mxu0 0.0
    %247 = vmatpush2.msra.mxu0 0.0
    %248 = vmatprep.subr.mxu0 0.0
    %249 = vmatpush2.msra.mxu0 0.0
    %250 = vmatprep.subr.mxu0 0.0
    %251 = vmatpush2.msra.mxu0 0.0
    %252 = vmatprep.subr.mxu0 0.0
    %253 = vmatpush2.msra.mxu0 0.0
    %254 = vmatprep.subr.mxu0 0.0
    %255 = vmatpush2.msra.mxu0 0.0
    %256 = vmatprep.subr.mxu0 0.0
    %257 = vmatpush2.msra.mxu0 0.0
    %258 = vmatprep.subr.mxu0 0.0
    %259 = vmatpush2.msra.mxu0 0.0
    %260 = vmatprep.subr.mxu0 0.0
    %261 = vmatpush2.msra.mxu0 0.0
    %262 = vmatprep.subr.mxu0 0.0
    %263 = vmatpush2.msra.mxu0 0.0
    %264 = vmatprep.subr.mxu0 0.0
    %265 = vmatpush2.msra.mxu0 0.0
    %266 = vmatprep.subr.mxu0 0.0
    %267 = vmatpush2.msra.mxu0 0.0
    %268 = vmatprep.subr.mxu0 0.0
    %269 = vmatpush2.msra.mxu0 0.0
    %270 = vmatprep.mubr.f32.mxu0 0.0
    %271 = vmatmul.mubr.f32.gmra.mxu0 %v204
    %v272 = vpop.f32.mrf.mxu0
    %v273 = vadd.f32 %v201, %v272
    %v274 = vpop.f32.mrf.mxu0
    %275 = vdwg.mxu0
    %276 = vst.msk [vmem:[#allocation8] sm:$0x3] %vm154, %v273
    // Predicated region
    $region42: #{fused_mlp.1} parent=1 // pred_check
      _
    $region43: #{fused_mlp.1} parent=1 // pred_check_branch
      %278 = sbr.rel (0) target = $region45
    $region44: #{fused_mlp.1} parent=1 // pred_region
      %s280 = ssub.s32 32, 32
      %281 = vsyncadd [#allocation4], %s280
      %s283 = sshll.u32 [#allocation8], 4
      %s284 = int_to_ptr.vmem [resolvable:$true] %s283
      %286 = dma.vmem_to_hbm [thread:$0]  %s284, 32, %s7, [#allocation4]
    $region45: #{fused_mlp.1} parent=1 // pred_fallthru
      _
    // Predicated region
    $region46: #{fused_mlp.1} parent=1 // pred_check
      _
    $region47: #{fused_mlp.1} parent=1 // pred_check_branch
      %288 = sbr.rel (0) target = $region49
    $region48: #{fused_mlp.1} parent=1 // pred_region
      %289 = dma.done [#allocation4], 32
    $region49: #{fused_mlp.1} parent=1 // pred_fallthru
      _
    %290 = vsyncpa [#allocation3], 1
    %291 = vsyncpa [#allocation6], 1
    %292 = vsyncpa [#allocation4], 1

</llo_original>
